<compile_context>
chip_gen: v7x
topology: tpu7x:2x2x1
jax: 0.10.0
libtpu: 0.0.40
codegen_flags: <defaults>
</compile_context>

<pallas_src>
import jax
import jax.numpy as jnp
from jax.experimental import pallas as pl
from jax.experimental.pallas import tpu as pltpu


def _round_up(a, b):
    return (a + b - 1) // b * b


def _vmem_limit_bytes():
    # Generation-aware VMEM limit with headroom (v7x: ~54 MiB, v5e/v6e: ~109 MiB).
    try:
        cap = int(pltpu.get_tpu_info().vmem_capacity_bytes)
    except Exception:
        cap = 64 * 1024 * 1024
    return max(32 * 1024 * 1024, min(int(cap * 0.85), 112 * 1024 * 1024))


@jax.jit
def downsample_conv3d(x, weight, bias):
    """nn.Conv3d(in_ch, in_ch, 3, stride=2, padding=1) forward.

    x:      (N, Cin, D, H, W) float32  (PyTorch NCDHW)
    weight: (Cout, Cin, 3, 3, 3)
    bias:   (Cout,)
    returns (N, Cout, Do, Ho, Wo) float32, Do = ceil(D/2), etc.
    """
    N, Cin, D, H, W = x.shape
    Cout = weight.shape[0]
    Do, Ho, Wo = (D + 1) // 2, (H + 1) // 2, (W + 1) // 2

    Cin_p = _round_up(Cin, 8)   # sublane-aligned channels (aligned in-kernel concat)
    Wg = Wo + 1                 # parity-grid cols == extended output width
    Hg = Ho + 2                 # parity-grid rows (covers the +1 tap shift + wrap)
    Mg = Hg * Wg                # flattened parity grid length (kernel input lanes)
    Me = Ho * Wg                # extended output columns per depth plane (lanes)
    Dp = 2 * Do + 1             # padded depth planes

    # ---- glue (one fused XLA copy): bf16 cast, zero-pad, H/W parity split, flatten.
    # X[n, dp, (ph*2+pw)*Cin_p + c, i*Wg + j] == x_padded[n, c, dp, 2i+ph, 2j+pw]
    x_pad = jnp.pad(x.astype(jnp.bfloat16),
                    ((0, 0), (0, Cin_p - Cin),
                     (1, Dp - D - 1), (1, 2 * Hg - H - 1), (1, 2 * Wg - W - 1)))
    X = x_pad.reshape(N, Cin_p, Dp, Hg, 2, Wg, 2)
    X = jnp.transpose(X, (0, 2, 4, 6, 1, 3, 5))       # (N, Dp, ph, pw, Cin_p, Hg, Wg)
    X = X.reshape(N, Dp, 4 * Cin_p, Mg)

    # ---- weights: torch (Cout, Cin, kd, kh, kw) -> (kd, Cout, 9*Cin_p), K=(kh,kw,cin)
    w_pad = jnp.pad(weight, ((0, 0), (0, Cin_p - Cin), (0, 0), (0, 0), (0, 0)))
    w_r = jnp.transpose(w_pad, (2, 0, 3, 4, 1)).reshape(3, Cout, 9 * Cin_p)
    w_r = w_r.astype(jnp.bfloat16)
    b_col = bias.reshape(Cout, 1).astype(jnp.float32)

    def kernel(x0_ref, x1_ref, x2_ref, w_ref, b_ref, o_ref):
        # x*_ref: (4*Cin_p, Mg) bf16 -- parity-split depth planes 2*do + kd
        # w_ref : (3, Cout, 9*Cin_p) bf16, resident (constant index map)
        # b_ref : (Cout, 1) f32, resident
        # o_ref : (Cout, Me) f32, lane-dense over the flattened output plane
        acc = None
        for kd, xr in enumerate((x0_ref, x1_ref, x2_ref)):
            taps = []
            for kh in range(3):
                for kw in range(3):
                    row0 = ((kh % 2) * 2 + (kw % 2)) * Cin_p   # parity block
                    col0 = (kh // 2) * Wg + (kw // 2)          # flat window shift
                    taps.append(xr[row0:row0 + Cin_p, col0:col0 + Me])
            p = jnp.concatenate(taps, axis=0)                  # (9*Cin_p, Me)
            part = jnp.dot(w_ref[kd], p, preferred_element_type=jnp.float32)
            acc = part if acc is None else acc + part
        o_ref[...] = (acc + b_ref[...]).astype(o_ref.dtype)

    def x_spec(kd):
        return pl.BlockSpec((None, None, 4 * Cin_p, Mg),
                            lambda n, d: (n, 2 * d + kd, 0, 0))

    out = pl.pallas_call(
        kernel,
        out_shape=jax.ShapeDtypeStruct((N, Do, Cout, Me), jnp.float32),
        grid=(N, Do),
        in_specs=[
            x_spec(0), x_spec(1), x_spec(2),                         # 3-plane depth halo
            pl.BlockSpec((3, Cout, 9 * Cin_p), lambda n, d: (0, 0, 0)),  # weight, resident
            pl.BlockSpec((Cout, 1), lambda n, d: (0, 0)),                # bias, resident
        ],
        out_specs=pl.BlockSpec((None, None, Cout, Me), lambda n, d: (n, d, 0, 0)),
        compiler_params=pltpu.CompilerParams(
            dimension_semantics=("parallel", "parallel"),
            vmem_limit_bytes=_vmem_limit_bytes(),
        ),
    )(X, X, X, w_r, b_col)

    # strip the garbage column (wo == Wo) and return to NCDHW in one fused copy
    out = out.reshape(N, Do, Cout, Ho, Wg)[..., :Wo]
    return jnp.transpose(out, (0, 2, 1, 3, 4))


def init_downsample_params(key, in_ch):
    # xavier_uniform_ on (Cout, Cin, 3, 3, 3): fan_in = fan_out = in_ch * 27
    fan = in_ch * 27
    limit = (6.0 / (fan + fan)) ** 0.5
    w = jax.random.uniform(key, (in_ch, in_ch, 3, 3, 3), jnp.float32, -limit, limit)
    b = jnp.zeros((in_ch,), jnp.float32)   # init.zeros_
    return w, b


if __name__ == "__main__":
    key = jax.random.PRNGKey(0)
    k_x, k_w = jax.random.split(key)

    N, C, D, H, W = 2, 4, 8, 8, 8
    x = jax.random.normal(k_x, (N, C, D, H, W), jnp.float32)
    weight, bias = init_downsample_params(k_w, C)

    out = jax.block_until_ready(downsample_conv3d(x, weight, bias))

    # reference: XLA conv with the same semantics as torch Conv3d(3, stride=2, pad=1)
    ref = jax.lax.conv_general_dilated(
        x, weight, window_strides=(2, 2, 2),
        padding=((1, 1), (1, 1), (1, 1)),
        dimension_numbers=("NCDHW", "OIDHW", "NCDHW"),
    ) + bias.reshape(1, -1, 1, 1, 1)
    assert out.shape == ref.shape, (out.shape, ref.shape)
    # bf16 operands + f32 accumulation -> intentional precision trade-off vs f32 torch.
    err = float(jnp.max(jnp.abs(out - ref)))
    assert jnp.allclose(out, ref, atol=5e-2, rtol=5e-2), err

    print("KERNEL_OK")
</pallas_src>

<mosaic_0001>
module attributes {stable_mosaic.version = 11 : i64} {
  func.func @kernel(%arg0: i32, %arg1: i32, %arg2: memref<1x1x32x30xbf16, #tpu.memory_space<vmem>>, %arg3: memref<1x1x32x30xbf16, #tpu.memory_space<vmem>>, %arg4: memref<1x1x32x30xbf16, #tpu.memory_space<vmem>>, %arg5: memref<3x4x72xbf16, #tpu.memory_space<vmem>>, %arg6: memref<4x1xf32, #tpu.memory_space<vmem>>, %arg7: memref<1x1x4x20xf32, #tpu.memory_space<vmem>>) attributes {dimension_semantics = [#tpu.dimension_semantics<parallel>, #tpu.dimension_semantics<parallel>], iteration_bounds = array<i64: 2, 4>, scalar_prefetch = 0 : i64, scratch_operands = 0 : i64, tpu.core_type = #tpu.core_type<tc>, window_params = [{transform_indices = @transform_0, window_bounds = array<i64: 1, 1, 32, 30>}, {transform_indices = @transform_1, window_bounds = array<i64: 1, 1, 32, 30>}, {transform_indices = @transform_2, window_bounds = array<i64: 1, 1, 32, 30>}, {pipeline_mode = #tpu.pipeline_mode<synchronous>, transform_indices = @transform_3, window_bounds = array<i64: 3, 4, 72>}, {pipeline_mode = #tpu.pipeline_mode<synchronous>, transform_indices = @transform_4, window_bounds = array<i64: 4, 1>}, {transform_indices = @transform_5, window_bounds = array<i64: 1, 1, 4, 20>}]} {
    %c0 = arith.constant 0 : index
    %c0_0 = arith.constant 0 : index
    %c0_1 = arith.constant 0 : index
    %c0_2 = arith.constant 0 : index
    %0 = vector.load %arg2[%c0, %c0_0, %c0_1, %c0_2] : memref<1x1x32x30xbf16, #tpu.memory_space<vmem>>, vector<1x1x8x20xbf16>
    %1 = vector.shape_cast %0 : vector<1x1x8x20xbf16> to vector<8x20xbf16>
    %c0_3 = arith.constant 0 : index
    %c0_4 = arith.constant 0 : index
    %c8 = arith.constant 8 : index
    %c0_5 = arith.constant 0 : index
    %2 = vector.load %arg2[%c0_3, %c0_4, %c8, %c0_5] : memref<1x1x32x30xbf16, #tpu.memory_space<vmem>>, vector<1x1x8x20xbf16>
    %3 = vector.shape_cast %2 : vector<1x1x8x20xbf16> to vector<8x20xbf16>
    %c0_6 = arith.constant 0 : index
    %c0_7 = arith.constant 0 : index
    %c0_8 = arith.constant 0 : index
    %c1 = arith.constant 1 : index
    %4 = vector.load %arg2[%c0_6, %c0_7, %c0_8, %c1] : memref<1x1x32x30xbf16, #tpu.memory_space<vmem>>, vector<1x1x8x20xbf16>
    %5 = vector.shape_cast %4 : vector<1x1x8x20xbf16> to vector<8x20xbf16>
    %c0_9 = arith.constant 0 : index
    %c0_10 = arith.constant 0 : index
    %c16 = arith.constant 16 : index
    %c0_11 = arith.constant 0 : index
    %6 = vector.load %arg2[%c0_9, %c0_10, %c16, %c0_11] : memref<1x1x32x30xbf16, #tpu.memory_space<vmem>>, vector<1x1x8x20xbf16>
    %7 = vector.shape_cast %6 : vector<1x1x8x20xbf16> to vector<8x20xbf16>
    %c0_12 = arith.constant 0 : index
    %c0_13 = arith.constant 0 : index
    %c24 = arith.constant 24 : index
    %c0_14 = arith.constant 0 : index
    %8 = vector.load %arg2[%c0_12, %c0_13, %c24, %c0_14] : memref<1x1x32x30xbf16, #tpu.memory_space<vmem>>, vector<1x1x8x20xbf16>
    %9 = vector.shape_cast %8 : vector<1x1x8x20xbf16> to vector<8x20xbf16>
    %c0_15 = arith.constant 0 : index
    %c0_16 = arith.constant 0 : index
    %c16_17 = arith.constant 16 : index
    %c1_18 = arith.constant 1 : index
    %10 = vector.load %arg2[%c0_15, %c0_16, %c16_17, %c1_18] : memref<1x1x32x30xbf16, #tpu.memory_space<vmem>>, vector<1x1x8x20xbf16>
    %11 = vector.shape_cast %10 : vector<1x1x8x20xbf16> to vector<8x20xbf16>
    %c0_19 = arith.constant 0 : index
    %c0_20 = arith.constant 0 : index
    %c0_21 = arith.constant 0 : index
    %c5 = arith.constant 5 : index
    %12 = vector.load %arg2[%c0_19, %c0_20, %c0_21, %c5] : memref<1x1x32x30xbf16, #tpu.memory_space<vmem>>, vector<1x1x8x20xbf16>
    %13 = vector.shape_cast %12 : vector<1x1x8x20xbf16> to vector<8x20xbf16>
    %c0_22 = arith.constant 0 : index
    %c0_23 = arith.constant 0 : index
    %c8_24 = arith.constant 8 : index
    %c5_25 = arith.constant 5 : index
    %14 = vector.load %arg2[%c0_22, %c0_23, %c8_24, %c5_25] : memref<1x1x32x30xbf16, #tpu.memory_space<vmem>>, vector<1x1x8x20xbf16>
    %15 = vector.shape_cast %14 : vector<1x1x8x20xbf16> to vector<8x20xbf16>
    %c0_26 = arith.constant 0 : index
    %c0_27 = arith.constant 0 : index
    %c0_28 = arith.constant 0 : index
    %c6 = arith.constant 6 : index
    %16 = vector.load %arg2[%c0_26, %c0_27, %c0_28, %c6] : memref<1x1x32x30xbf16, #tpu.memory_space<vmem>>, vector<1x1x8x20xbf16>
    %17 = vector.shape_cast %16 : vector<1x1x8x20xbf16> to vector<8x20xbf16>
    %18 = tpu.concatenate %1, %3, %5, %7, %9, %11, %13, %15, %17 in 0 : vector<8x20xbf16>, vector<8x20xbf16>, vector<8x20xbf16>, vector<8x20xbf16>, vector<8x20xbf16>, vector<8x20xbf16>, vector<8x20xbf16>, vector<8x20xbf16>, vector<8x20xbf16> -> vector<72x20xbf16>
    %c0_29 = arith.constant 0 : index
    %c0_30 = arith.constant 0 : index
    %c0_31 = arith.constant 0 : index
    %19 = vector.load %arg5[%c0_29, %c0_30, %c0_31] : memref<3x4x72xbf16, #tpu.memory_space<vmem>>, vector<1x4x72xbf16>
    %20 = vector.shape_cast %19 : vector<1x4x72xbf16> to vector<4x72xbf16>
    %cst = arith.constant dense<0.000000e+00> : vector<4x20xf32>
    %21 = tpu.matmul %20, %18, %cst {dimension_numbers = #tpu.dot_dimension_numbers<[1], [0], [0], [1], [0, 0, 1, 1], [], []>} : vector<4x72xbf16>, vector<72x20xbf16>, vector<4x20xf32> -> vector<4x20xf32>
    %c0_32 = arith.constant 0 : index
    %c0_33 = arith.constant 0 : index
    %c0_34 = arith.constant 0 : index
    %c0_35 = arith.constant 0 : index
    %22 = vector.load %arg3[%c0_32, %c0_33, %c0_34, %c0_35] : memref<1x1x32x30xbf16, #tpu.memory_space<vmem>>, vector<1x1x8x20xbf16>
    %23 = vector.shape_cast %22 : vector<1x1x8x20xbf16> to vector<8x20xbf16>
    %c0_36 = arith.constant 0 : index
    %c0_37 = arith.constant 0 : index
    %c8_38 = arith.constant 8 : index
    %c0_39 = arith.constant 0 : index
    %24 = vector.load %arg3[%c0_36, %c0_37, %c8_38, %c0_39] : memref<1x1x32x30xbf16, #tpu.memory_space<vmem>>, vector<1x1x8x20xbf16>
    %25 = vector.shape_cast %24 : vector<1x1x8x20xbf16> to vector<8x20xbf16>
    %c0_40 = arith.constant 0 : index
    %c0_41 = arith.constant 0 : index
    %c0_42 = arith.constant 0 : index
    %c1_43 = arith.constant 1 : index
    %26 = vector.load %arg3[%c0_40, %c0_41, %c0_42, %c1_43] : memref<1x1x32x30xbf16, #tpu.memory_space<vmem>>, vector<1x1x8x20xbf16>
    %27 = vector.shape_cast %26 : vector<1x1x8x20xbf16> to vector<8x20xbf16>
    %c0_44 = arith.constant 0 : index
    %c0_45 = arith.constant 0 : index
    %c16_46 = arith.constant 16 : index
    %c0_47 = arith.constant 0 : index
    %28 = vector.load %arg3[%c0_44, %c0_45, %c16_46, %c0_47] : memref<1x1x32x30xbf16, #tpu.memory_space<vmem>>, vector<1x1x8x20xbf16>
    %29 = vector.shape_cast %28 : vector<1x1x8x20xbf16> to vector<8x20xbf16>
    %c0_48 = arith.constant 0 : index
    %c0_49 = arith.constant 0 : index
    %c24_50 = arith.constant 24 : index
    %c0_51 = arith.constant 0 : index
    %30 = vector.load %arg3[%c0_48, %c0_49, %c24_50, %c0_51] : memref<1x1x32x30xbf16, #tpu.memory_space<vmem>>, vector<1x1x8x20xbf16>
    %31 = vector.shape_cast %30 : vector<1x1x8x20xbf16> to vector<8x20xbf16>
    %c0_52 = arith.constant 0 : index
    %c0_53 = arith.constant 0 : index
    %c16_54 = arith.constant 16 : index
    %c1_55 = arith.constant 1 : index
    %32 = vector.load %arg3[%c0_52, %c0_53, %c16_54, %c1_55] : memref<1x1x32x30xbf16, #tpu.memory_space<vmem>>, vector<1x1x8x20xbf16>
    %33 = vector.shape_cast %32 : vector<1x1x8x20xbf16> to vector<8x20xbf16>
    %c0_56 = arith.constant 0 : index
    %c0_57 = arith.constant 0 : index
    %c0_58 = arith.constant 0 : index
    %c5_59 = arith.constant 5 : index
    %34 = vector.load %arg3[%c0_56, %c0_57, %c0_58, %c5_59] : memref<1x1x32x30xbf16, #tpu.memory_space<vmem>>, vector<1x1x8x20xbf16>
    %35 = vector.shape_cast %34 : vector<1x1x8x20xbf16> to vector<8x20xbf16>
    %c0_60 = arith.constant 0 : index
    %c0_61 = arith.constant 0 : index
    %c8_62 = arith.constant 8 : index
    %c5_63 = arith.constant 5 : index
    %36 = vector.load %arg3[%c0_60, %c0_61, %c8_62, %c5_63] : memref<1x1x32x30xbf16, #tpu.memory_space<vmem>>, vector<1x1x8x20xbf16>
    %37 = vector.shape_cast %36 : vector<1x1x8x20xbf16> to vector<8x20xbf16>
    %c0_64 = arith.constant 0 : index
    %c0_65 = arith.constant 0 : index
    %c0_66 = arith.constant 0 : index
    %c6_67 = arith.constant 6 : index
    %38 = vector.load %arg3[%c0_64, %c0_65, %c0_66, %c6_67] : memref<1x1x32x30xbf16, #tpu.memory_space<vmem>>, vector<1x1x8x20xbf16>
    %39 = vector.shape_cast %38 : vector<1x1x8x20xbf16> to vector<8x20xbf16>
    %40 = tpu.concatenate %23, %25, %27, %29, %31, %33, %35, %37, %39 in 0 : vector<8x20xbf16>, vector<8x20xbf16>, vector<8x20xbf16>, vector<8x20xbf16>, vector<8x20xbf16>, vector<8x20xbf16>, vector<8x20xbf16>, vector<8x20xbf16>, vector<8x20xbf16> -> vector<72x20xbf16>
    %c1_68 = arith.constant 1 : index
    %c0_69 = arith.constant 0 : index
    %c0_70 = arith.constant 0 : index
    %41 = vector.load %arg5[%c1_68, %c0_69, %c0_70] : memref<3x4x72xbf16, #tpu.memory_space<vmem>>, vector<1x4x72xbf16>
    %42 = vector.shape_cast %41 : vector<1x4x72xbf16> to vector<4x72xbf16>
    %cst_71 = arith.constant dense<0.000000e+00> : vector<4x20xf32>
    %43 = tpu.matmul %42, %40, %cst_71 {dimension_numbers = #tpu.dot_dimension_numbers<[1], [0], [0], [1], [0, 0, 1, 1], [], []>} : vector<4x72xbf16>, vector<72x20xbf16>, vector<4x20xf32> -> vector<4x20xf32>
    %44 = arith.addf %21, %43 : vector<4x20xf32>
    %c0_72 = arith.constant 0 : index
    %c0_73 = arith.constant 0 : index
    %c0_74 = arith.constant 0 : index
    %c0_75 = arith.constant 0 : index
    %45 = vector.load %arg4[%c0_72, %c0_73, %c0_74, %c0_75] : memref<1x1x32x30xbf16, #tpu.memory_space<vmem>>, vector<1x1x8x20xbf16>
    %46 = vector.shape_cast %45 : vector<1x1x8x20xbf16> to vector<8x20xbf16>
    %c0_76 = arith.constant 0 : index
    %c0_77 = arith.constant 0 : index
    %c8_78 = arith.constant 8 : index
    %c0_79 = arith.constant 0 : index
    %47 = vector.load %arg4[%c0_76, %c0_77, %c8_78, %c0_79] : memref<1x1x32x30xbf16, #tpu.memory_space<vmem>>, vector<1x1x8x20xbf16>
    %48 = vector.shape_cast %47 : vector<1x1x8x20xbf16> to vector<8x20xbf16>
    %c0_80 = arith.constant 0 : index
    %c0_81 = arith.constant 0 : index
    %c0_82 = arith.constant 0 : index
    %c1_83 = arith.constant 1 : index
    %49 = vector.load %arg4[%c0_80, %c0_81, %c0_82, %c1_83] : memref<1x1x32x30xbf16, #tpu.memory_space<vmem>>, vector<1x1x8x20xbf16>
    %50 = vector.shape_cast %49 : vector<1x1x8x20xbf16> to vector<8x20xbf16>
    %c0_84 = arith.constant 0 : index
    %c0_85 = arith.constant 0 : index
    %c16_86 = arith.constant 16 : index
    %c0_87 = arith.constant 0 : index
    %51 = vector.load %arg4[%c0_84, %c0_85, %c16_86, %c0_87] : memref<1x1x32x30xbf16, #tpu.memory_space<vmem>>, vector<1x1x8x20xbf16>
    %52 = vector.shape_cast %51 : vector<1x1x8x20xbf16> to vector<8x20xbf16>
    %c0_88 = arith.constant 0 : index
    %c0_89 = arith.constant 0 : index
    %c24_90 = arith.constant 24 : index
    %c0_91 = arith.constant 0 : index
    %53 = vector.load %arg4[%c0_88, %c0_89, %c24_90, %c0_91] : memref<1x1x32x30xbf16, #tpu.memory_space<vmem>>, vector<1x1x8x20xbf16>
    %54 = vector.shape_cast %53 : vector<1x1x8x20xbf16> to vector<8x20xbf16>
    %c0_92 = arith.constant 0 : index
    %c0_93 = arith.constant 0 : index
    %c16_94 = arith.constant 16 : index
    %c1_95 = arith.constant 1 : index
    %55 = vector.load %arg4[%c0_92, %c0_93, %c16_94, %c1_95] : memref<1x1x32x30xbf16, #tpu.memory_space<vmem>>, vector<1x1x8x20xbf16>
    %56 = vector.shape_cast %55 : vector<1x1x8x20xbf16> to vector<8x20xbf16>
    %c0_96 = arith.constant 0 : index
    %c0_97 = arith.constant 0 : index
    %c0_98 = arith.constant 0 : index
    %c5_99 = arith.constant 5 : index
    %57 = vector.load %arg4[%c0_96, %c0_97, %c0_98, %c5_99] : memref<1x1x32x30xbf16, #tpu.memory_space<vmem>>, vector<1x1x8x20xbf16>
    %58 = vector.shape_cast %57 : vector<1x1x8x20xbf16> to vector<8x20xbf16>
    %c0_100 = arith.constant 0 : index
    %c0_101 = arith.constant 0 : index
    %c8_102 = arith.constant 8 : index
    %c5_103 = arith.constant 5 : index
    %59 = vector.load %arg4[%c0_100, %c0_101, %c8_102, %c5_103] : memref<1x1x32x30xbf16, #tpu.memory_space<vmem>>, vector<1x1x8x20xbf16>
    %60 = vector.shape_cast %59 : vector<1x1x8x20xbf16> to vector<8x20xbf16>
    %c0_104 = arith.constant 0 : index
    %c0_105 = arith.constant 0 : index
    %c0_106 = arith.constant 0 : index
    %c6_107 = arith.constant 6 : index
    %61 = vector.load %arg4[%c0_104, %c0_105, %c0_106, %c6_107] : memref<1x1x32x30xbf16, #tpu.memory_space<vmem>>, vector<1x1x8x20xbf16>
    %62 = vector.shape_cast %61 : vector<1x1x8x20xbf16> to vector<8x20xbf16>
    %63 = tpu.concatenate %46, %48, %50, %52, %54, %56, %58, %60, %62 in 0 : vector<8x20xbf16>, vector<8x20xbf16>, vector<8x20xbf16>, vector<8x20xbf16>, vector<8x20xbf16>, vector<8x20xbf16>, vector<8x20xbf16>, vector<8x20xbf16>, vector<8x20xbf16> -> vector<72x20xbf16>
    %c2 = arith.constant 2 : index
    %c0_108 = arith.constant 0 : index
    %c0_109 = arith.constant 0 : index
    %64 = vector.load %arg5[%c2, %c0_108, %c0_109] : memref<3x4x72xbf16, #tpu.memory_space<vmem>>, vector<1x4x72xbf16>
    %65 = vector.shape_cast %64 : vector<1x4x72xbf16> to vector<4x72xbf16>
    %cst_110 = arith.constant dense<0.000000e+00> : vector<4x20xf32>
    %66 = tpu.matmul %65, %63, %cst_110 {dimension_numbers = #tpu.dot_dimension_numbers<[1], [0], [0], [1], [0, 0, 1, 1], [], []>} : vector<4x72xbf16>, vector<72x20xbf16>, vector<4x20xf32> -> vector<4x20xf32>
    %67 = arith.addf %44, %66 : vector<4x20xf32>
    %c0_111 = arith.constant 0 : index
    %c0_112 = arith.constant 0 : index
    %68 = vector.load %arg6[%c0_111, %c0_112] : memref<4x1xf32, #tpu.memory_space<vmem>>, vector<4x1xf32>
    %69 = vector.broadcast %68 : vector<4x1xf32> to vector<4x20xf32>
    %70 = arith.addf %67, %69 : vector<4x20xf32>
    %c0_113 = arith.constant 0 : index
    %c0_114 = arith.constant 0 : index
    %c0_115 = arith.constant 0 : index
    %c0_116 = arith.constant 0 : index
    %71 = vector.load %arg7[%c0_113, %c0_114, %c0_115, %c0_116] : memref<1x1x4x20xf32, #tpu.memory_space<vmem>>, vector<1x1x4x20xf32>
    %72 = vector.shape_cast %71 : vector<1x1x4x20xf32> to vector<4x20xf32>
    %73 = vector.shape_cast %70 : vector<4x20xf32> to vector<1x1x4x20xf32>
    tpu.vector_store %arg7[%c0_113, %c0_114, %c0_115, %c0_116], %73 {strides = array<i32>} : memref<1x1x4x20xf32, #tpu.memory_space<vmem>>, vector<1x1x4x20xf32>,
    return
  }
  func.func @transform_0(%arg0: i32, %arg1: i32) -> (i32, i32, i32, i32) {
    %c2_i32 = arith.constant 2 : i32
    %0 = arith.muli %c2_i32, %arg1 : i32
    %c0_i32 = arith.constant 0 : i32
    %1 = arith.addi %0, %c0_i32 : i32
    %c0_i32_0 = arith.constant 0 : i32
    %c0_i32_1 = arith.constant 0 : i32
    %c0_i32_2 = arith.constant 0 : i32
    return %arg0, %1, %c0_i32_0, %c0_i32_1 : i32, i32, i32, i32
  }
  func.func @transform_1(%arg0: i32, %arg1: i32) -> (i32, i32, i32, i32) {
    %c2_i32 = arith.constant 2 : i32
    %0 = arith.muli %c2_i32, %arg1 : i32
    %c1_i32 = arith.constant 1 : i32
    %1 = arith.addi %0, %c1_i32 : i32
    %c0_i32 = arith.constant 0 : i32
    %c0_i32_0 = arith.constant 0 : i32
    %c0_i32_1 = arith.constant 0 : i32
    return %arg0, %1, %c0_i32, %c0_i32_0 : i32, i32, i32, i32
  }
  func.func @transform_2(%arg0: i32, %arg1: i32) -> (i32, i32, i32, i32) {
    %c2_i32 = arith.constant 2 : i32
    %0 = arith.muli %c2_i32, %arg1 : i32
    %c2_i32_0 = arith.constant 2 : i32
    %1 = arith.addi %0, %c2_i32_0 : i32
    %c0_i32 = arith.constant 0 : i32
    %c0_i32_1 = arith.constant 0 : i32
    %c0_i32_2 = arith.constant 0 : i32
    return %arg0, %1, %c0_i32, %c0_i32_1 : i32, i32, i32, i32
  }
  func.func @transform_3(%arg0: i32, %arg1: i32) -> (i32, i32, i32) {
    %c0_i32 = arith.constant 0 : i32
    %c0_i32_0 = arith.constant 0 : i32
    %c0_i32_1 = arith.constant 0 : i32
    %c0_i32_2 = arith.constant 0 : i32
    return %c0_i32, %c0_i32_0, %c0_i32_1 : i32, i32, i32
  }
  func.func @transform_4(%arg0: i32, %arg1: i32) -> (i32, i32) {
    %c0_i32 = arith.constant 0 : i32
    %c0_i32_0 = arith.constant 0 : i32
    %c0_i32_1 = arith.constant 0 : i32
    return %c0_i32, %c0_i32_0 : i32, i32
  }
  func.func @transform_5(%arg0: i32, %arg1: i32) -> (i32, i32, i32, i32) {
    %c0_i32 = arith.constant 0 : i32
    %c0_i32_0 = arith.constant 0 : i32
    %c0_i32_1 = arith.constant 0 : i32
    return %arg0, %arg1, %c0_i32, %c0_i32_0 : i32, i32, i32, i32
  }
}

</mosaic_0001>

<llo_original>
// kernel: downsample_conv3d.1
$region0: #{downsample_conv3d.1}
  #allocation0 [shape = 'u32[]', space=smem, size = 0x4, offset = 0x4, fixed_abs, tag = 'smem constant byte address 0x4 - core index']
  #allocation1 [shape = 'u32[144,128]{1,0:T(1,128)}', space=vmem, size = 0x12000, scoped, tag = 'internal scratch']
  %s0 = inlined_call_operand.vmem [shape: bf16[2,9,32,30], index: 0, kind: input, shape index: {}, may-alias: {0,1,2}]
  %s1 = inlined_call_operand.vmem [shape: bf16[2,9,32,30], index: 1, kind: input, shape index: {}, may-alias: {0,1,2}]
  %s2 = inlined_call_operand.vmem [shape: bf16[2,9,32,30], index: 2, kind: input, shape index: {}, may-alias: {0,1,2}]
  %s3 = inlined_call_operand.vmem [shape: bf16[3,4,72], index: 3, kind: input, shape index: {}]
  %s4 = inlined_call_operand.vmem [shape: f32[4,1], index: 4, kind: input, shape index: {}]
  %s5 = inlined_call_operand.vmem [shape: f32[2,4,4,20], index: 5, kind: output, shape index: {}]
  %s6 = sld [smem:[#allocation0]]
  $region53: #{downsample_conv3d.1} parent=0
    _
  %s8 = ssub.s32 1, %s6
  %s9 = scalar_select 0, %s8, %s6
  loop: start=0, step=1, limit=10
  $region2: #{downsample_conv3d.1} parent=0 // loop_pre_header
    _
  $region3: #{downsample_conv3d.1} parent=0 // loop_header
    %s11 = sphi 0, %s15
    %p12 = scmp.ge.s32.totalorder %s11, 10
    %s18 = sphi 0, %s30
    %s19 = sphi 0, %s26
    %s20 = sphi 0, %s18
    %s21 = sphi 0, %s19
    %s22 = sphi 0, %s20
    %s23 = sphi 0, %s21
    %s37 = sphi 0, %s39
    %s40 = sphi 0, %s37
    %s41 = sphi 0, %s40
    %s57 = sphi 0, %s41
    %s69 = sphi 0, %s71
    %s72 = sphi 0, %s69
    %s73 = sphi 0, %s72
    %s89 = sphi 0, %s73
    %s101 = sphi 0, %s103
    %s104 = sphi 0, %s101
    %s105 = sphi 0, %s104
    %s121 = sphi 0, %s105
    %s125 = sphi 0, %s125
    %s127 = sphi 0, %s125
    %s128 = sphi 0, %s127
    %s142 = sphi 0, %s128
    %s146 = sphi 0, %s146
    %s148 = sphi 0, %s146
    %s149 = sphi 0, %s148
    %s163 = sphi 0, %s149
    %s171 = sphi 0, %s173
    %s174 = sphi 0, %s171
    %s175 = sphi 0, %s174
    %s191 = sphi 0, %s175
  $region4: #{downsample_conv3d.1} parent=0 // loop_header_branch
    %14 = sbr.rel (%p12) target = $region8
  $region5: #{downsample_conv3d.1} parent=0 // loop_body
    %s16 = ssub.s32 %s11, 1
    %s17 = ssub.s32 %s11, 2
    %s24 = sadd.s32 1, %s19
    %p25 = scmp.ge.s32.totalorder %s24, 4
    %s26 = scalar_select %p25, 0, %s24
    %s27 = sadd.s32 1, %s18
    %s28 = scalar_select %p25, %s27, %s18
    %p29 = scmp.ge.s32.totalorder %s28, 2
    %s30 = scalar_select %p29, 0, %s28
    %s31 = smul.u32 %s19, 2
    %s32 = smul.u32 %s26, 2
    %s33 = ssub.s32 %s18, %s30
    %s34 = ssub.s32 %s31, %s32
    %s35 = sor.u32 %s33, %s34
    %p36 = scmp.eq.s32.totalorder %s35, 0
    %s38 = sadd.s32 %s37, 1
    %s39 = scalar_select %p36, %s37, %s38
    %p42 = pneg %p36
    %p43 = scmp.eq.s32.totalorder %s11, 7
    %p44 = por %p42, %p43
    %p45 = scmp.ne.s32.totalorder %s37, %s40
    %p46 = scmp.eq.s32.totalorder %s11, 0
    %p47 = por %p45, %p46
    %p48 = scmp.ne.s32.totalorder %s37, %s40
    %p49 = scmp.eq.s32.totalorder %s16, 7
    %p50 = por %p48, %p49
    %p51 = scmp.ne.s32.totalorder %s40, %s41
    %p52 = scmp.eq.s32.totalorder %s16, 0
    %p53 = por %p51, %p52
    %p54 = scmp.ne.s32.totalorder %s40, %s41
    %p55 = scmp.eq.s32.totalorder %s17, 7
    %p56 = por %p54, %p55
    %p58 = scmp.ne.s32.totalorder %s41, %s57
    %p59 = scmp.eq.s32.totalorder %s17, 0
    %p60 = por %p58, %p59
    %s61 = smul.u32 %s19, 2
    %s62 = sadd.s32 %s61, 1
    %s63 = smul.u32 %s26, 2
    %s64 = sadd.s32 %s63, 1
    %s65 = ssub.s32 %s18, %s30
    %s66 = ssub.s32 %s62, %s64
    %s67 = sor.u32 %s65, %s66
    %p68 = scmp.eq.s32.totalorder %s67, 0
    %s70 = sadd.s32 %s69, 1
    %s71 = scalar_select %p68, %s69, %s70
    %p74 = pneg %p68
    %p75 = scmp.eq.s32.totalorder %s11, 7
    %p76 = por %p74, %p75
    %p77 = scmp.ne.s32.totalorder %s69, %s72
    %p78 = scmp.eq.s32.totalorder %s11, 0
    %p79 = por %p77, %p78
    %p80 = scmp.ne.s32.totalorder %s69, %s72
    %p81 = scmp.eq.s32.totalorder %s16, 7
    %p82 = por %p80, %p81
    %p83 = scmp.ne.s32.totalorder %s72, %s73
    %p84 = scmp.eq.s32.totalorder %s16, 0
    %p85 = por %p83, %p84
    %p86 = scmp.ne.s32.totalorder %s72, %s73
    %p87 = scmp.eq.s32.totalorder %s17, 7
    %p88 = por %p86, %p87
    %p90 = scmp.ne.s32.totalorder %s73, %s89
    %p91 = scmp.eq.s32.totalorder %s17, 0
    %p92 = por %p90, %p91
    %s93 = smul.u32 %s19, 2
    %s94 = sadd.s32 %s93, 2
    %s95 = smul.u32 %s26, 2
    %s96 = sadd.s32 %s95, 2
    %s97 = ssub.s32 %s18, %s30
    %s98 = ssub.s32 %s94, %s96
    %s99 = sor.u32 %s97, %s98
    %p100 = scmp.eq.s32.totalorder %s99, 0
    %s102 = sadd.s32 %s101, 1
    %s103 = scalar_select %p100, %s101, %s102
    %p106 = pneg %p100
    %p107 = scmp.eq.s32.totalorder %s11, 7
    %p108 = por %p106, %p107
    %p109 = scmp.ne.s32.totalorder %s101, %s104
    %p110 = scmp.eq.s32.totalorder %s11, 0
    %p111 = por %p109, %p110
    %p112 = scmp.ne.s32.totalorder %s101, %s104
    %p113 = scmp.eq.s32.totalorder %s16, 7
    %p114 = por %p112, %p113
    %p115 = scmp.ne.s32.totalorder %s104, %s105
    %p116 = scmp.eq.s32.totalorder %s16, 0
    %p117 = por %p115, %p116
    %p118 = scmp.ne.s32.totalorder %s104, %s105
    %p119 = scmp.eq.s32.totalorder %s17, 7
    %p120 = por %p118, %p119
    %p122 = scmp.ne.s32.totalorder %s105, %s121
    %p123 = scmp.eq.s32.totalorder %s17, 0
    %p124 = por %p122, %p123
    %s126 = sadd.s32 %s125, 1
    %p129 = scmp.eq.s32.totalorder %s11, 7
    %p130 = scmp.ne.s32.totalorder %s125, %s127
    %p131 = scmp.eq.s32.totalorder %s11, 0
    %p132 = por %p130, %p131
    %p133 = scmp.ne.s32.totalorder %s125, %s127
    %p134 = scmp.eq.s32.totalorder %s16, 7
    %p135 = por %p133, %p134
    %p136 = scmp.ne.s32.totalorder %s127, %s128
    %p137 = scmp.eq.s32.totalorder %s16, 0
    %p138 = por %p136, %p137
    %p139 = scmp.ne.s32.totalorder %s127, %s128
    %p140 = scmp.eq.s32.totalorder %s17, 7
    %p141 = por %p139, %p140
    %p143 = scmp.ne.s32.totalorder %s128, %s142
    %p144 = scmp.eq.s32.totalorder %s17, 0
    %p145 = por %p143, %p144
    %s147 = sadd.s32 %s146, 1
    %p150 = scmp.eq.s32.totalorder %s11, 7
    %p151 = scmp.ne.s32.totalorder %s146, %s148
    %p152 = scmp.eq.s32.totalorder %s11, 0
    %p153 = por %p151, %p152
    %p154 = scmp.ne.s32.totalorder %s146, %s148
    %p155 = scmp.eq.s32.totalorder %s16, 7
    %p156 = por %p154, %p155
    %p157 = scmp.ne.s32.totalorder %s148, %s149
    %p158 = scmp.eq.s32.totalorder %s16, 0
    %p159 = por %p157, %p158
    %p160 = scmp.ne.s32.totalorder %s148, %s149
    %p161 = scmp.eq.s32.totalorder %s17, 7
    %p162 = por %p160, %p161
    %p164 = scmp.ne.s32.totalorder %s149, %s163
    %p165 = scmp.eq.s32.totalorder %s17, 0
    %p166 = por %p164, %p165
    %s167 = ssub.s32 %s18, %s30
    %s168 = ssub.s32 %s19, %s26
    %s169 = sor.u32 %s167, %s168
    %p170 = scmp.eq.s32.totalorder %s169, 0
    %s172 = sadd.s32 %s171, 1
    %s173 = scalar_select %p170, %s171, %s172
    %p176 = pneg %p170
    %p177 = scmp.eq.s32.totalorder %s11, 7
    %p178 = por %p176, %p177
    %p179 = scmp.ne.s32.totalorder %s171, %s174
    %p180 = scmp.eq.s32.totalorder %s11, 0
    %p181 = por %p179, %p180
    %p182 = scmp.ne.s32.totalorder %s171, %s174
    %p183 = scmp.eq.s32.totalorder %s16, 7
    %p184 = por %p182, %p183
    %p185 = scmp.ne.s32.totalorder %s174, %s175
    %p186 = scmp.eq.s32.totalorder %s16, 0
    %p187 = por %p185, %p186
    %p188 = scmp.ne.s32.totalorder %s174, %s175
    %p189 = scmp.eq.s32.totalorder %s17, 7
    %p190 = por %p188, %p189
    %p192 = scmp.ne.s32.totalorder %s175, %s191
    %p193 = scmp.eq.s32.totalorder %s17, 0
    %p194 = por %p192, %p193
    %p195 = scmp.le.s32.totalorder 1, %s11
    %p196 = scmp.lt.s32.totalorder %s11, 9
    %p197 = pnand %p195, %p196
    %p198 = pneg %p197
    // Predicated region
    $region9: #{downsample_conv3d.1} parent=5 // pred_check
      _
    $region10: #{downsample_conv3d.1} parent=5 // pred_check_branch
      %200 = sbr.rel (%p197) target = $region12
    $region11: #{downsample_conv3d.1} parent=5 // pred_region
      %s201 = ssub.s32 %s11, 1
      // Predicated region
      $region13: #{downsample_conv3d.1} parent=11 // pred_check
        %p202 = pneg %p138
      $region14: #{downsample_conv3d.1} parent=11 // pred_check_branch
        %204 = sbr.rel (%p202) target = $region16
      $region15: #{downsample_conv3d.1} parent=11 // pred_region
        _
      $region16: #{downsample_conv3d.1} parent=11 // pred_fallthru
        _
      // Predicated region
      $region17: #{downsample_conv3d.1} parent=11 // pred_check
        %p205 = pneg %p159
      $region18: #{downsample_conv3d.1} parent=11 // pred_check_branch
        %207 = sbr.rel (%p205) target = $region20
      $region19: #{downsample_conv3d.1} parent=11 // pred_region
        _
      $region20: #{downsample_conv3d.1} parent=11 // pred_fallthru
        _
    $region12: #{downsample_conv3d.1} parent=5 // pred_fallthru
      _
    %p208 = scmp.lt.s32.totalorder %s11, 8
    // Predicated region
    $region21: #{downsample_conv3d.1} parent=5 // pred_check
      %p209 = pneg %p208
    $region22: #{downsample_conv3d.1} parent=5 // pred_check_branch
      %211 = sbr.rel (%p209) target = $region24
    $region23: #{downsample_conv3d.1} parent=5 // pred_region
      // Predicated region
      $region25: #{downsample_conv3d.1} parent=23 // pred_check
        %p212 = pneg %p47
      $region26: #{downsample_conv3d.1} parent=23 // pred_check_branch
        %214 = sbr.rel (%p212) target = $region28
      $region27: #{downsample_conv3d.1} parent=23 // pred_region
        %s215 = smul.u32 %s19, 2
        %p216 = scmp.lt.s32.totalorder %s18, 1
        %s217 = scalar_select %p216, %s18, 1
        %p218 = scmp.lt.s32.totalorder %s215, 8
        %s219 = scalar_select %p218, %s215, 8
        %s220 = smul.addr %s219, 4
        %s221 = smul.addr %s217, 36
        %s222 = sadd.s32 %s220, %s221
        %s223 = smul.addr %s222, 4
        %s224 = scalar_lea.vmem %s0, %s223
        %s225 = smul.u32 %s19, 2
      $region28: #{downsample_conv3d.1} parent=23 // pred_fallthru
        _
      // Predicated region
      $region29: #{downsample_conv3d.1} parent=23 // pred_check
        %p226 = pneg %p79
      $region30: #{downsample_conv3d.1} parent=23 // pred_check_branch
        %228 = sbr.rel (%p226) target = $region32
      $region31: #{downsample_conv3d.1} parent=23 // pred_region
        %s229 = smul.u32 %s19, 2
        %s230 = sadd.s32 %s229, 1
        %p231 = scmp.lt.s32.totalorder %s18, 1
        %s232 = scalar_select %p231, %s18, 1
        %p233 = scmp.lt.s32.totalorder %s230, 8
        %s234 = scalar_select %p233, %s230, 8
        %s235 = smul.addr %s234, 4
        %s236 = smul.addr %s232, 36
        %s237 = sadd.s32 %s235, %s236
        %s238 = smul.addr %s237, 4
        %s239 = scalar_lea.vmem %s1, %s238
        %s240 = smul.u32 %s19, 2
        %s241 = sadd.s32 %s240, 1
      $region32: #{downsample_conv3d.1} parent=23 // pred_fallthru
        _
      // Predicated region
      $region33: #{downsample_conv3d.1} parent=23 // pred_check
        %p242 = pneg %p111
      $region34: #{downsample_conv3d.1} parent=23 // pred_check_branch
        %244 = sbr.rel (%p242) target = $region36
      $region35: #{downsample_conv3d.1} parent=23 // pred_region
        %s245 = smul.u32 %s19, 2
        %s246 = sadd.s32 %s245, 2
        %p247 = scmp.lt.s32.totalorder %s18, 1
        %s248 = scalar_select %p247, %s18, 1
        %p249 = scmp.lt.s32.totalorder %s246, 8
        %s250 = scalar_select %p249, %s246, 8
        %s251 = smul.addr %s250, 4
        %s252 = smul.addr %s248, 36
        %s253 = sadd.s32 %s251, %s252
        %s254 = smul.addr %s253, 4
        %s255 = scalar_lea.vmem %s2, %s254
        %s256 = smul.u32 %s19, 2
        %s257 = sadd.s32 %s256, 2
      $region36: #{downsample_conv3d.1} parent=23 // pred_fallthru
        _
    $region24: #{downsample_conv3d.1} parent=5 // pred_fallthru
      _
    %p258 = scmp.le.s32.totalorder 1, %s11
    %p259 = scmp.lt.s32.totalorder %s11, 9
    %p260 = pnand %p258, %p259
    %p261 = pneg %p260
    // Predicated region
    $region37: #{downsample_conv3d.1} parent=5 // pred_check
      _
    $region38: #{downsample_conv3d.1} parent=5 // pred_check_branch
      %263 = sbr.rel (%p260) target = $region40
    $region39: #{downsample_conv3d.1} parent=5 // pred_region
      %s264 = ssub.s32 %s11, 1
      %s265 = smul.u32 %s21, 2
      %p266 = scmp.lt.s32.totalorder %s20, 1
      %s267 = scalar_select %p266, %s20, 1
      %p268 = scmp.lt.s32.totalorder %s265, 8
      %s269 = scalar_select %p268, %s265, 8
      %s270 = smul.addr %s269, 4
      %s271 = smul.addr %s267, 36
      %s272 = sadd.s32 %s270, %s271
      %s273 = smul.addr %s272, 4
      %s274 = scalar_lea.vmem %s0, %s273
      %p275 = pneg %p53
      %p276 = pneg %p50
      %s277 = smul.u32 %s21, 2
      %s278 = sadd.s32 %s277, 1
      %p279 = scmp.lt.s32.totalorder %s20, 1
      %s280 = scalar_select %p279, %s20, 1
      %p281 = scmp.lt.s32.totalorder %s278, 8
      %s282 = scalar_select %p281, %s278, 8
      %s283 = smul.addr %s282, 4
      %s284 = smul.addr %s280, 36
      %s285 = sadd.s32 %s283, %s284
      %s286 = smul.addr %s285, 4
      %s287 = scalar_lea.vmem %s1, %s286
      %p288 = pneg %p85
      %p289 = pneg %p82
      %s290 = smul.u32 %s21, 2
      %s291 = sadd.s32 %s290, 2
      %p292 = scmp.lt.s32.totalorder %s20, 1
      %s293 = scalar_select %p292, %s20, 1
      %p294 = scmp.lt.s32.totalorder %s291, 8
      %s295 = scalar_select %p294, %s291, 8
      %s296 = smul.addr %s295, 4
      %s297 = smul.addr %s293, 36
      %s298 = sadd.s32 %s296, %s297
      %s299 = smul.addr %s298, 4
      %s300 = scalar_lea.vmem %s2, %s299
      %p301 = pneg %p117
      %p302 = pneg %p114
      %p303 = pneg %p138
      %p304 = pneg %p135
      %p305 = pneg %p159
      %p306 = pneg %p156
      %p307 = pneg %p187
      %p308 = pneg %p184
      %p309 = scmp.lt.s32.totalorder %s20, 1
      %s310 = scalar_select %p309, %s20, 1
      %p311 = scmp.lt.s32.totalorder %s21, 3
      %s312 = scalar_select %p311, %s21, 3
      %s313 = smul.addr %s310, 4
      %s314 = sadd.s32 %s312, %s313
      %s315 = smul.addr %s314, 4
      %s316 = scalar_lea.vmem %s5, %s315
      %s317 = smul.u32 %s21, 2
      %p318 = scmp.lt.s32.totalorder %s20, 1
      %s319 = scalar_select %p318, %s20, 1
      %p320 = scmp.lt.s32.totalorder %s317, 8
      %s321 = scalar_select %p320, %s317, 8
      %s322 = smul.addr %s321, 4
      %s323 = smul.addr %s319, 36
      %s324 = sadd.s32 %s322, %s323
      %s325 = smul.addr %s324, 4
      %s326 = scalar_lea.vmem %s0, %s325
      %s327 = smul.u32 %s21, 2
      %s328 = smul.u32 %s21, 2
      %s329 = sadd.s32 %s328, 1
      %p330 = scmp.lt.s32.totalorder %s20, 1
      %s331 = scalar_select %p330, %s20, 1
      %p332 = scmp.lt.s32.totalorder %s329, 8
      %s333 = scalar_select %p332, %s329, 8
      %s334 = smul.addr %s333, 4
      %s335 = smul.addr %s331, 36
      %s336 = sadd.s32 %s334, %s335
      %s337 = smul.addr %s336, 4
      %s338 = scalar_lea.vmem %s1, %s337
      %s339 = smul.u32 %s21, 2
      %s340 = sadd.s32 %s339, 1
      %s341 = smul.u32 %s21, 2
      %s342 = sadd.s32 %s341, 2
      %p343 = scmp.lt.s32.totalorder %s20, 1
      %s344 = scalar_select %p343, %s20, 1
      %p345 = scmp.lt.s32.totalorder %s342, 8
      %s346 = scalar_select %p345, %s342, 8
      %s347 = smul.addr %s346, 4
      %s348 = smul.addr %s344, 36
      %s349 = sadd.s32 %s347, %s348
      %s350 = smul.addr %s349, 4
      %s351 = scalar_lea.vmem %s2, %s350
      %s352 = smul.u32 %s21, 2
      %s353 = sadd.s32 %s352, 2
      %p354 = scmp.lt.s32.totalorder %s20, 1
      %s355 = scalar_select %p354, %s20, 1
      %p356 = scmp.lt.s32.totalorder %s21, 3
      %s357 = scalar_select %p356, %s21, 3
      %s358 = smul.addr %s355, 4
      %s359 = sadd.s32 %s357, %s358
      %s360 = smul.addr %s359, 4
      %s361 = scalar_lea.vmem %s5, %s360
      %v363 = vld [vmem:[%s326] sm:$0xf]
      %v364 = vld [vmem:[%s326 + $0x4] sm:$0xf]
      %v365 = vld [vmem:[%s326 + $0x8] sm:$0xf]
      %v366 = vld [vmem:[%s326 + $0xc] sm:$0xf]
      %v368 = vunpack.c.l.b16 %v364
      %v369 = vpack.c.b16 %v368, %v368
      %v371 = vunpack.c.l.b16 %v363
      %v372 = vpack.c.b16 %v371, %v371
      %373 = vrot.lane.b32.xlu0 %v372, 127
      %v374 = vpop.permute.xlu0 %373
      %v376 = vunpack.c.l.b16 %v365
      %v377 = vpack.c.b16 %v376, %v376
      %378 = vrot.lane.b32.xlu0 %v377, 127
      %v379 = vpop.permute.xlu0 %378
      %380 = vrot.lane.b32.xlu0 %v372, 123
      %v381 = vpop.permute.xlu0 %380
      %382 = vrot.lane.b32.xlu0 %v369, 123
      %v383 = vpop.permute.xlu0 %382
      %384 = vrot.lane.b32.xlu0 %v372, 122
      %v385 = vpop.permute.xlu0 %384
      %vm386 = vcmask 1043456
      %v389 = vsel %vm386, %v363, %v369
      %v393 = vsel %vm386, %v374, %v377
      %v397 = vsel %vm386, %v366, %v379
      %v401 = vsel %vm386, %v381, %v383
      %v403 = vld [vmem:[%s3] sm:$0x3]
      %v404 = vld [vmem:[%s338] sm:$0xf]
      %v405 = vld [vmem:[%s338 + $0x4] sm:$0xf]
      %v406 = vld [vmem:[%s338 + $0x8] sm:$0xf]
      %v407 = vld [vmem:[%s338 + $0xc] sm:$0xf]
      %v409 = vunpack.c.l.b16 %v405
      %v410 = vpack.c.b16 %v409, %v409
      %v412 = vunpack.c.l.b16 %v404
      %v413 = vpack.c.b16 %v412, %v412
      %414 = vrot.lane.b32.xlu0 %v413, 127
      %v415 = vpop.permute.xlu0 %414
      %v417 = vunpack.c.l.b16 %v406
      %v418 = vpack.c.b16 %v417, %v417
      %419 = vrot.lane.b32.xlu0 %v418, 127
      %v420 = vpop.permute.xlu0 %419
      %421 = vrot.lane.b32.xlu0 %v413, 123
      %v422 = vpop.permute.xlu0 %421
      %423 = vrot.lane.b32.xlu0 %v410, 123
      %v424 = vpop.permute.xlu0 %423
      %425 = vrot.lane.b32.xlu0 %v413, 122
      %v426 = vpop.permute.xlu0 %425
      %v429 = vsel %vm386, %v404, %v410
      %v433 = vsel %vm386, %v415, %v418
      %v437 = vsel %vm386, %v407, %v420
      %v441 = vsel %vm386, %v422, %v424
      %s443 = scalar_lea.vmem %s3, 2
      %v444 = vld [vmem:[%s443] sm:$0x3]
      %vm445 = vcmask 588800
      %v447 = vsel %vm445, %v444, 0
      %v450 = vsel %vm386, %v426, 0
      %452 = vmatprep.subr.bf16.mxu0 0
      %453 = vmatpush1.bf16.msra.mxu0 %v429
      %454 = vmatprep.subr.bf16.mxu0 0
      %455 = vmatpush1.bf16.msra.mxu0 %v433
      %456 = vmatprep.subr.bf16.mxu0 0
      %457 = vmatpush1.bf16.msra.mxu0 %v437
      %458 = vmatprep.subr.bf16.mxu0 0
      %459 = vmatpush1.bf16.msra.mxu0 %v441
      %460 = vmatprep.subr.bf16.mxu0 0
      %461 = vmatpush1.bf16.msra.mxu0 %v450
      %462 = vmatprep.subr.bf16.mxu0 0
      %463 = vmatpush1.bf16.msra.mxu0 0
      %464 = vmatprep.subr.bf16.mxu0 0
      %465 = vmatpush1.bf16.msra.mxu0 0
      %466 = vmatprep.subr.bf16.mxu0 0
      %467 = vmatpush1.bf16.msra.mxu0 0
      %468 = vmatprep.subr.bf16.mxu0 0
      %469 = vmatpush1.bf16.msra.mxu0 0
      %470 = vmatprep.subr.bf16.mxu0 0
      %471 = vmatpush1.bf16.msra.mxu0 0
      %472 = vmatprep.subr.bf16.mxu0 0
      %473 = vmatpush1.bf16.msra.mxu0 0
      %474 = vmatprep.subr.bf16.mxu0 0
      %475 = vmatpush1.bf16.msra.mxu0 0
      %476 = vmatprep.subr.bf16.mxu0 0
      %477 = vmatpush1.bf16.msra.mxu0 0
      %478 = vmatprep.subr.bf16.mxu0 0
      %479 = vmatpush1.bf16.msra.mxu0 0
      %480 = vmatprep.subr.bf16.mxu0 0
      %481 = vmatpush1.bf16.msra.mxu0 0
      %482 = vmatprep.subr.bf16.mxu0 0
      %483 = vmatpush1.bf16.msra.mxu0 0
      %484 = vmatprep.mubr.bf16.mxu0 0
      %485 = vmatmul.mubr.bf16.gmra.mrb[0].mxu0 %v447
      %v486 = vpop.f32.mrb[0].mxu0
      %v487 = vadd.f32 0.0, %v486
      %v488 = vpop.f32.mrb[0].mxu0
      %v489 = vpop.f32.mrb[0].mxu0
      %v490 = vpop.f32.mrb[0].mxu0
      %491 = vdwg.mxu0
      %v493 = vsel %vm445, %v403, 0
      %v496 = vsel %vm386, %v385, 0
      %498 = vmatprep.subr.bf16.mxu0 0
      %499 = vmatpush1.bf16.msra.mxu0 %v389
      %500 = vmatprep.subr.bf16.mxu0 0
      %501 = vmatpush1.bf16.msra.mxu0 %v393
      %502 = vmatprep.subr.bf16.mxu0 0
      %503 = vmatpush1.bf16.msra.mxu0 %v397
      %504 = vmatprep.subr.bf16.mxu0 0
      %505 = vmatpush1.bf16.msra.mxu0 %v401
      %506 = vmatprep.subr.bf16.mxu0 0
      %507 = vmatpush1.bf16.msra.mxu0 %v496
      %508 = vmatprep.subr.bf16.mxu0 0
      %509 = vmatpush1.bf16.msra.mxu0 0
      %510 = vmatprep.subr.bf16.mxu0 0
      %511 = vmatpush1.bf16.msra.mxu0 0
      %512 = vmatprep.subr.bf16.mxu0 0
      %513 = vmatpush1.bf16.msra.mxu0 0
      %514 = vmatprep.subr.bf16.mxu0 0
      %515 = vmatpush1.bf16.msra.mxu0 0
      %516 = vmatprep.subr.bf16.mxu0 0
      %517 = vmatpush1.bf16.msra.mxu0 0
      %518 = vmatprep.subr.bf16.mxu0 0
      %519 = vmatpush1.bf16.msra.mxu0 0
      %520 = vmatprep.subr.bf16.mxu0 0
      %521 = vmatpush1.bf16.msra.mxu0 0
      %522 = vmatprep.subr.bf16.mxu0 0
      %523 = vmatpush1.bf16.msra.mxu0 0
      %524 = vmatprep.subr.bf16.mxu0 0
      %525 = vmatpush1.bf16.msra.mxu0 0
      %526 = vmatprep.subr.bf16.mxu0 0
      %527 = vmatpush1.bf16.msra.mxu0 0
      %528 = vmatprep.subr.bf16.mxu0 0
      %529 = vmatpush1.bf16.msra.mxu0 0
      %530 = vmatprep.mubr.bf16.mxu0 0
      %531 = vmatmul.mubr.bf16.gmra.mrb[0].mxu0 %v493
      %v532 = vpop.f32.mrb[0].mxu0
      %v533 = vadd.f32 %v487, %v532
      %v534 = vpop.f32.mrb[0].mxu0
      %v535 = vpop.f32.mrb[0].mxu0
      %v536 = vpop.f32.mrb[0].mxu0
      %537 = vdwg.mxu0
      %v538 = vld [vmem:[%s351] sm:$0xf]
      %v539 = vld [vmem:[%s351 + $0x4] sm:$0xf]
      %v540 = vld [vmem:[%s351 + $0x8] sm:$0xf]
      %v541 = vld [vmem:[%s351 + $0xc] sm:$0xf]
      %v543 = vunpack.c.l.b16 %v539
      %v544 = vpack.c.b16 %v543, %v543
      %v546 = vunpack.c.l.b16 %v538
      %v547 = vpack.c.b16 %v546, %v546
      %548 = vrot.lane.b32.xlu0 %v547, 127
      %v549 = vpop.permute.xlu0 %548
      %v551 = vunpack.c.l.b16 %v540
      %v552 = vpack.c.b16 %v551, %v551
      %553 = vrot.lane.b32.xlu0 %v552, 127
      %v554 = vpop.permute.xlu0 %553
      %555 = vrot.lane.b32.xlu0 %v547, 123
      %v556 = vpop.permute.xlu0 %555
      %557 = vrot.lane.b32.xlu0 %v544, 123
      %v558 = vpop.permute.xlu0 %557
      %559 = vrot.lane.b32.xlu0 %v547, 122
      %v560 = vpop.permute.xlu0 %559
      %v563 = vsel %vm386, %v538, %v544
      %v567 = vsel %vm386, %v549, %v552
      %v571 = vsel %vm386, %v541, %v554
      %v575 = vsel %vm386, %v556, %v558
      %s577 = scalar_lea.vmem %s3, 4
      %v578 = vld [vmem:[%s577] sm:$0x3]
      %v580 = vsel %vm445, %v578, 0
      %v583 = vsel %vm386, %v560, 0
      %585 = vmatprep.subr.bf16.mxu0 0
      %586 = vmatpush1.bf16.msra.mxu0 %v563
      %587 = vmatprep.subr.bf16.mxu0 0
      %588 = vmatpush1.bf16.msra.mxu0 %v567
      %589 = vmatprep.subr.bf16.mxu0 0
      %590 = vmatpush1.bf16.msra.mxu0 %v571
      %591 = vmatprep.subr.bf16.mxu0 0
      %592 = vmatpush1.bf16.msra.mxu0 %v575
      %593 = vmatprep.subr.bf16.mxu0 0
      %594 = vmatpush1.bf16.msra.mxu0 %v583
      %595 = vmatprep.subr.bf16.mxu0 0
      %596 = vmatpush1.bf16.msra.mxu0 0
      %597 = vmatprep.subr.bf16.mxu0 0
      %598 = vmatpush1.bf16.msra.mxu0 0
      %599 = vmatprep.subr.bf16.mxu0 0
      %600 = vmatpush1.bf16.msra.mxu0 0
      %601 = vmatprep.subr.bf16.mxu0 0
      %602 = vmatpush1.bf16.msra.mxu0 0
      %603 = vmatprep.subr.bf16.mxu0 0
      %604 = vmatpush1.bf16.msra.mxu0 0
      %605 = vmatprep.subr.bf16.mxu0 0
      %606 = vmatpush1.bf16.msra.mxu0 0
      %607 = vmatprep.subr.bf16.mxu0 0
      %608 = vmatpush1.bf16.msra.mxu0 0
      %609 = vmatprep.subr.bf16.mxu0 0
      %610 = vmatpush1.bf16.msra.mxu0 0
      %611 = vmatprep.subr.bf16.mxu0 0
      %612 = vmatpush1.bf16.msra.mxu0 0
      %613 = vmatprep.subr.bf16.mxu0 0
      %614 = vmatpush1.bf16.msra.mxu0 0
      %615 = vmatprep.subr.bf16.mxu0 0
      %616 = vmatpush1.bf16.msra.mxu0 0
      %617 = vmatprep.mubr.bf16.mxu0 0
      %618 = vmatmul.mubr.bf16.gmra.mrb[0].mxu0 %v580
      %v619 = vpop.f32.mrb[0].mxu0
      %v620 = vadd.f32 0.0, %v619
      %v621 = vpop.f32.mrb[0].mxu0
      %v622 = vpop.f32.mrb[0].mxu0
      %v623 = vpop.f32.mrb[0].mxu0
      %624 = vdwg.mxu0
      %v625 = vadd.f32 %v533, %v620
      %v626 = vld [vmem:[%s4] sm:$0xf]
      %628 = vset.pattern.permute.xlu0 0
      %629 = vperm.xlu0 %628, %v626
      %v630 = vpop.permute.xlu0 %629
      %v632 = vadd.f32 %v625, %v630
      %vm633 = vcmask 158720
      %634 = vst.msk [vmem:[%s361] sm:$0xf] %vm633, %v632
      %p635 = scmp.lt.s32.totalorder %s20, 1
      %s636 = scalar_select %p635, %s20, 1
      %p637 = scmp.lt.s32.totalorder %s21, 3
      %s638 = scalar_select %p637, %s21, 3
      %s639 = smul.addr %s636, 4
      %s640 = sadd.s32 %s638, %s639
      %s641 = smul.addr %s640, 4
      %s642 = scalar_lea.vmem %s5, %s641
      // Predicated region
      $region41: #{downsample_conv3d.1} parent=39 // pred_check
        %p643 = pneg %p184
      $region42: #{downsample_conv3d.1} parent=39 // pred_check_branch
        %645 = sbr.rel (%p643) target = $region44
      $region43: #{downsample_conv3d.1} parent=39 // pred_region
        _
      $region44: #{downsample_conv3d.1} parent=39 // pred_fallthru
        _
    $region40: #{downsample_conv3d.1} parent=5 // pred_fallthru
      _
    %p646 = scmp.le.s32.totalorder 2, %s11
    // Predicated region
    $region45: #{downsample_conv3d.1} parent=5 // pred_check
      %p647 = pneg %p646
    $region46: #{downsample_conv3d.1} parent=5 // pred_check_branch
      %649 = sbr.rel (%p647) target = $region48
    $region47: #{downsample_conv3d.1} parent=5 // pred_region
      %s650 = ssub.s32 %s11, 2
      // Predicated region
      $region49: #{downsample_conv3d.1} parent=47 // pred_check
        %p651 = pneg %p190
      $region50: #{downsample_conv3d.1} parent=47 // pred_check_branch
        %653 = sbr.rel (%p651) target = $region52
      $region51: #{downsample_conv3d.1} parent=47 // pred_region
        %p654 = scmp.lt.s32.totalorder %s22, 1
        %s655 = scalar_select %p654, %s22, 1
        %p656 = scmp.lt.s32.totalorder %s23, 3
        %s657 = scalar_select %p656, %s23, 3
        %s658 = smul.addr %s655, 4
        %s659 = sadd.s32 %s657, %s658
        %s660 = smul.addr %s659, 4
        %s661 = scalar_lea.vmem %s5, %s660
      $region52: #{downsample_conv3d.1} parent=47 // pred_fallthru
        _
    $region48: #{downsample_conv3d.1} parent=5 // pred_fallthru
      _
  $region6: #{downsample_conv3d.1} parent=0 // loop_footer
    %s15 = sadd.s32 1, %s11
  $region7: #{downsample_conv3d.1} parent=0 // loop_footer_branch
    %10 = sbr.rel target = $region3
  $region8: #{downsample_conv3d.1} parent=0 // loop_exit
    _

</llo_original>
